<compile_context>
chip_gen: v5e
topology: v5e:2x2
jax: 0.10.0
libtpu: 0.0.40
codegen_flags: <defaults>
</compile_context>

<pallas_src>
import functools
import math

import jax
import jax.numpy as jnp
from jax.experimental import pallas as pl
from jax.experimental.pallas import tpu as pltpu


def _graph_attn_bias_kernel(clamp_hi, ab_ref, sp_ref, edge_ref,
                            wf_ref, wsp_ref, t_ref, out_ref):
    # Block shapes (one graph per grid step):
    #   ab_ref  : [1, Np1, Np1]      f32   attention bias
    #   sp_ref  : [1, N*N, 1]        f32   spatial distances (flattened)
    #   edge_ref: [1, N*N, Draw*8]   bf16  edge features, hops*feat flattened last
    #   wf_ref  : [Draw*8, H]        bf16  fused (W_edge @ W_dis[d]) weights
    #   wsp_ref : [1, H]             f32   spatial_pos_encoder weight
    #   t_ref   : [1, H]             f32   graph-token virtual distance
    #   out_ref : [1, Np1, Np1, H]   f32   heads-last output block
    _, Np1, _ = ab_ref.shape
    N = Np1 - 1
    H = wsp_ref.shape[1]

    # ---- base: 2*attn_bias (initial repeat + final add) plus virtual-token bias t
    #      on row 0 / column 0, assembled with a single full-tile store. ----
    ab2 = 2.0 * ab_ref[0]                                            # [Np1, Np1]
    ii = jax.lax.broadcasted_iota(jnp.int32, (Np1, Np1), 0)
    jj = jax.lax.broadcasted_iota(jnp.int32, (Np1, Np1), 1)
    tok = jnp.where(jnp.logical_or(ii == 0, jj == 0), 1.0, 0.0)      # [Np1, Np1]
    t = t_ref[...]                                                   # [1, H]
    out_ref[...] = (ab2[:, :, None] + tok[:, :, None] * t[None, :, :])[None]

    # ---- node-node bias: one fused MXU matmul (bf16 in, f32 acc) + spatial bias ----
    res = jnp.dot(edge_ref[0], wf_ref[...],
                  preferred_element_type=jnp.float32)                # [N*N, H] f32

    sp = sp_ref[0]                                                   # [N*N, 1] f32
    sp_ = jnp.where(sp == 0.0, 1.0, sp)
    sp_ = jnp.where(sp_ > 1.0, sp_ - 1.0, sp_)
    if math.isfinite(clamp_hi):                                      # static branch
        sp_ = jnp.clip(sp_, 0.0, clamp_hi)
    inv = pl.reciprocal(sp_, approx=True)                            # EUP, frees VALU

    inner = sp * wsp_ref[...] + res * inv                            # [N*N, H] f32
    # Final node-node value computed in registers; pure offset store (no RMW read).
    nn_val = ab2[1:, 1:][:, :, None] + inner.reshape(N, N, H)        # [N, N, H]
    out_ref[0, 1:, 1:, :] = nn_val


def graph_attn_bias_forward(attn_bias, spatial_pos, edge_input, params,
                            num_heads, multi_hop_max_dist):
    G, Np1, _ = attn_bias.shape
    N = Np1 - 1
    H = num_heads
    Draw = edge_input.shape[3]
    if multi_hop_max_dist > 0:
        D_used = min(multi_hop_max_dist, Draw)
        clamp_hi = float(multi_hop_max_dist)
    else:
        D_used = Draw
        clamp_hi = float("inf")
    D8 = Draw * 8

    # Fuse Linear(8->H) with the per-hop HxH edge_dis matmul. Zero-pad the fused
    # weight for truncated hops so edge_input needs no HBM slice/copy.
    w_dis = params["w_dis_full"].reshape(-1, H, H)[:D_used]          # [D_used, H, H]
    w_fused = jnp.einsum("ch,dhk->dck", params["w_edge"], w_dis,
                         precision=jax.lax.Precision.HIGHEST)        # [D_used, 8, H]
    if Draw > D_used:
        w_fused = jnp.concatenate(
            [w_fused, jnp.zeros((Draw - D_used, 8, H), w_fused.dtype)], axis=0)
    w_fused_flat = w_fused.reshape(D8, H).astype(jnp.bfloat16)

    # Layout plumbing only: contiguous reshapes + dtype casts, no big transposes.
    ab = attn_bias.astype(jnp.float32)                               # [G, Np1, Np1]
    sp = spatial_pos.reshape(G, N * N, 1).astype(jnp.float32)        # [G, N*N, 1]
    edge2 = edge_input.reshape(G, N * N, D8).astype(jnp.bfloat16)    # [G, N*N, D*8]
    w_sp = params["w_sp"].astype(jnp.float32)                        # [1, H]
    t = params["t"].astype(jnp.float32)                              # [1, H]

    kernel = functools.partial(_graph_attn_bias_kernel, clamp_hi)

    out = pl.pallas_call(
        kernel,
        grid=(G,),
        in_specs=[
            pl.BlockSpec((1, Np1, Np1), lambda g: (g, 0, 0)),
            pl.BlockSpec((1, N * N, 1), lambda g: (g, 0, 0)),
            pl.BlockSpec((1, N * N, D8), lambda g: (g, 0, 0)),
            pl.BlockSpec((D8, H), lambda g: (0, 0)),
            pl.BlockSpec((1, H), lambda g: (0, 0)),
            pl.BlockSpec((1, H), lambda g: (0, 0)),
        ],
        out_specs=pl.BlockSpec((1, Np1, Np1, H), lambda g: (g, 0, 0, 0)),
        out_shape=jax.ShapeDtypeStruct((G, Np1, Np1, H), jnp.float32),
        compiler_params=pltpu.CompilerParams(
            dimension_semantics=("parallel",),
            vmem_limit_bytes=32 * 1024 * 1024,
        ),
    )(ab, sp, edge2, w_fused_flat, w_sp, t)

    # Back to the PyTorch layout [G, H, N+1, N+1].
    return jnp.transpose(out, (0, 3, 1, 2))


def init_parameters(key, num_heads, num_edge_dis, n_layers):
    """Deterministic init mirroring the torch module's init_params."""
    H = num_heads
    k1, k2, k3, k4 = jax.random.split(key, 4)
    std_lin = 0.02 / math.sqrt(n_layers)
    # nn.Linear(8, H, bias=False).weight is [H, 8]; kernel consumes transpose [8, H]
    w_edge = (jax.random.normal(k1, (H, 8), jnp.float32) * std_lin).T
    # nn.Linear(1, H, bias=False).weight is [H, 1]; kernel consumes [1, H]
    w_sp = (jax.random.normal(k2, (H, 1), jnp.float32) * std_lin).T
    # nn.Embedding(num_edge_dis*H*H, 1).weight ~ N(0, 0.02)
    w_dis_full = jax.random.normal(k3, (num_edge_dis * H * H, 1), jnp.float32) * 0.02
    # nn.Embedding(1, H).weight ~ N(0, 0.02)  (graph_token_virtual_distance)
    t = jax.random.normal(k4, (1, H), jnp.float32) * 0.02
    return {"w_edge": jnp.asarray(w_edge), "w_sp": jnp.asarray(w_sp),
            "w_dis_full": w_dis_full, "t": t}


def reference_forward(attn_bias, spatial_pos, edge_input, params,
                      num_heads, multi_hop_max_dist):
    """Pure-JAX mirror of the torch forward, for a correctness check."""
    H = num_heads
    G, Np1, _ = attn_bias.shape
    N = Np1 - 1
    hp = jax.lax.Precision.HIGHEST

    gab = jnp.broadcast_to(attn_bias[:, None, :, :], (G, H, Np1, Np1))
    sp_bias = spatial_pos[..., None] * params["w_sp"].reshape(1, 1, 1, H)
    sp_bias = jnp.transpose(sp_bias, (0, 3, 1, 2))
    gab = gab.at[:, :, 1:, 1:].add(sp_bias)
    t = params["t"].reshape(1, H, 1)
    gab = gab.at[:, :, 1:, 0].add(t)
    gab = gab.at[:, :, 0, :].add(t)

    sp_ = jnp.where(spatial_pos == 0, 1.0, spatial_pos)
    sp_ = jnp.where(sp_ > 1, sp_ - 1.0, sp_)
    sp_ = jnp.clip(sp_, 0.0, float(multi_hop_max_dist))

    ei = edge_input[:, :, :, :multi_hop_max_dist, :]
    D = ei.shape[3]
    enc = jnp.einsum("gijdc,ch->gijdh", ei, params["w_edge"], precision=hp)
    flat = jnp.transpose(enc, (3, 0, 1, 2, 4)).reshape(D, G * N * N, H)
    wd = params["w_dis_full"].reshape(-1, H, H)[:D]
    flat = jnp.einsum("dxh,dhk->dxk", flat, wd, precision=hp)
    e = jnp.transpose(flat.reshape(D, G, N, N, H), (1, 2, 3, 0, 4))
    e = e.sum(-2) / sp_[..., None]
    e = jnp.transpose(e, (0, 3, 1, 2))
    gab = gab.at[:, :, 1:, 1:].add(e)
    gab = gab + attn_bias[:, None, :, :]
    return gab


if __name__ == "__main__":
    # small, self-consistent shapes
    G, N, H = 2, 8, 8                 # n_graph, n_node, num_heads
    multi_hop_max_dist = 4
    num_edge_dis = 8
    n_layers = 6
    max_dist_raw = 6                  # edge_input raw hop dim (truncated to 4)

    key = jax.random.PRNGKey(0)
    kp, ka, ks, ke = jax.random.split(key, 4)

    params = init_parameters(kp, H, num_edge_dis, n_layers)

    attn_bias = jax.random.normal(ka, (G, N + 1, N + 1), jnp.float32)
    spatial_pos = jax.random.randint(ks, (G, N, N), 0, 7).astype(jnp.float32)
    edge_input = jax.random.normal(ke, (G, N, N, max_dist_raw, 8), jnp.float32)

    fwd = jax.jit(functools.partial(graph_attn_bias_forward,
                                    num_heads=H,
                                    multi_hop_max_dist=multi_hop_max_dist))
    out = jax.block_until_ready(fwd(attn_bias, spatial_pos, edge_input, params))
    assert out.shape == (G, H, N + 1, N + 1)

    ref = jax.block_until_ready(
        reference_forward(attn_bias, spatial_pos, edge_input, params,
                          H, multi_hop_max_dist))
    err = float(jnp.max(jnp.abs(out - ref)))
    if err < 1e-3:
        print("KERNEL_OK")
    else:
        print(f"MISMATCH max_abs_err={err}")
</pallas_src>

<mosaic_0001>
module attributes {stable_mosaic.version = 11 : i64} {
  func.func @_graph_attn_bias_kernel(%arg0: i32, %arg1: memref<1x9x9xf32, #tpu.memory_space<vmem>>, %arg2: memref<1x64x1xf32, #tpu.memory_space<vmem>>, %arg3: memref<1x64x48xbf16, #tpu.memory_space<vmem>>, %arg4: memref<48x8xbf16, #tpu.memory_space<vmem>>, %arg5: memref<1x8xf32, #tpu.memory_space<vmem>>, %arg6: memref<1x8xf32, #tpu.memory_space<vmem>>, %arg7: memref<1x9x9x8xf32, #tpu.memory_space<vmem>>) attributes {dimension_semantics = [#tpu.dimension_semantics<parallel>], iteration_bounds = array<i64: 2>, scalar_prefetch = 0 : i64, scratch_operands = 0 : i64, tpu.core_type = #tpu.core_type<tc>, window_params = [{transform_indices = @transform_0, window_bounds = array<i64: 1, 9, 9>}, {transform_indices = @transform_1, window_bounds = array<i64: 1, 64, 1>}, {transform_indices = @transform_2, window_bounds = array<i64: 1, 64, 48>}, {pipeline_mode = #tpu.pipeline_mode<synchronous>, transform_indices = @transform_3, window_bounds = array<i64: 48, 8>}, {pipeline_mode = #tpu.pipeline_mode<synchronous>, transform_indices = @transform_4, window_bounds = array<i64: 1, 8>}, {pipeline_mode = #tpu.pipeline_mode<synchronous>, transform_indices = @transform_5, window_bounds = array<i64: 1, 8>}, {transform_indices = @transform_6, window_bounds = array<i64: 1, 9, 9, 8>}]} {
    %c0 = arith.constant 0 : index
    %c0_0 = arith.constant 0 : index
    %c0_1 = arith.constant 0 : index
    %0 = vector.load %arg1[%c0, %c0_0, %c0_1] : memref<1x9x9xf32, #tpu.memory_space<vmem>>, vector<1x9x9xf32>
    %1 = vector.shape_cast %0 : vector<1x9x9xf32> to vector<9x9xf32>
    %cst = arith.constant 2.000000e+00 : f32
    %2 = vector.broadcast %cst : f32 to vector<9x9xf32>
    %3 = arith.mulf %2, %1 : vector<9x9xf32>
    %4 = tpu.iota {dimensions = array<i32: 0>} : vector<9x9xi32>
    %5 = tpu.iota {dimensions = array<i32: 1>} : vector<9x9xi32>
    %c0_i32 = arith.constant 0 : i32
    %6 = vector.broadcast %c0_i32 : i32 to vector<9x9xi32>
    %7 = arith.cmpi eq, %4, %6 : vector<9x9xi32>
    %c0_i32_2 = arith.constant 0 : i32
    %8 = vector.broadcast %c0_i32_2 : i32 to vector<9x9xi32>
    %9 = arith.cmpi eq, %5, %8 : vector<9x9xi32>
    %10 = arith.ori %7, %9 : vector<9x9xi1>
    %cst_3 = arith.constant 1.000000e+00 : f32
    %cst_4 = arith.constant 0.000000e+00 : f32
    %11 = vector.broadcast %cst_3 : f32 to vector<9x9xf32>
    %12 = vector.broadcast %cst_4 : f32 to vector<9x9xf32>
    %13 = arith.select %10, %11, %12 : vector<9x9xi1>, vector<9x9xf32>
    %c0_5 = arith.constant 0 : index
    %c0_6 = arith.constant 0 : index
    %14 = vector.load %arg6[%c0_5, %c0_6] : memref<1x8xf32, #tpu.memory_space<vmem>>, vector<1x8xf32>
    %15 = vector.shape_cast %3 : vector<9x9xf32> to vector<9x9x1xf32>
    %16 = vector.shape_cast %13 : vector<9x9xf32> to vector<9x9x1xf32>
    %17 = vector.shape_cast %14 : vector<1x8xf32> to vector<1x1x8xf32>
    %18 = vector.broadcast %16 : vector<9x9x1xf32> to vector<9x9x8xf32>
    %19 = vector.broadcast %17 : vector<1x1x8xf32> to vector<9x9x8xf32>
    %20 = arith.mulf %18, %19 : vector<9x9x8xf32>
    %21 = vector.broadcast %15 : vector<9x9x1xf32> to vector<9x9x8xf32>
    %22 = arith.addf %21, %20 : vector<9x9x8xf32>
    %23 = vector.shape_cast %22 : vector<9x9x8xf32> to vector<1x9x9x8xf32>
    %c0_7 = arith.constant 0 : index
    %c0_8 = arith.constant 0 : index
    %c0_9 = arith.constant 0 : index
    %c0_10 = arith.constant 0 : index
    %24 = vector.load %arg7[%c0_7, %c0_8, %c0_9, %c0_10] : memref<1x9x9x8xf32, #tpu.memory_space<vmem>>, vector<1x9x9x8xf32>
    tpu.vector_store %arg7[%c0_7, %c0_8, %c0_9, %c0_10], %23 {strides = array<i32>} : memref<1x9x9x8xf32, #tpu.memory_space<vmem>>, vector<1x9x9x8xf32>,
    %c0_11 = arith.constant 0 : index
    %c0_12 = arith.constant 0 : index
    %c0_13 = arith.constant 0 : index
    %25 = vector.load %arg3[%c0_11, %c0_12, %c0_13] : memref<1x64x48xbf16, #tpu.memory_space<vmem>>, vector<1x64x48xbf16>
    %26 = vector.shape_cast %25 : vector<1x64x48xbf16> to vector<64x48xbf16>
    %c0_14 = arith.constant 0 : index
    %c0_15 = arith.constant 0 : index
    %27 = vector.load %arg4[%c0_14, %c0_15] : memref<48x8xbf16, #tpu.memory_space<vmem>>, vector<48x8xbf16>
    %cst_16 = arith.constant dense<0.000000e+00> : vector<64x8xf32>
    %28 = tpu.matmul %26, %27, %cst_16 {dimension_numbers = #tpu.dot_dimension_numbers<[1], [0], [0], [1], [0, 0, 1, 1], [], []>} : vector<64x48xbf16>, vector<48x8xbf16>, vector<64x8xf32> -> vector<64x8xf32>
    %c0_17 = arith.constant 0 : index
    %c0_18 = arith.constant 0 : index
    %c0_19 = arith.constant 0 : index
    %29 = vector.load %arg2[%c0_17, %c0_18, %c0_19] : memref<1x64x1xf32, #tpu.memory_space<vmem>>, vector<1x64x1xf32>
    %30 = vector.shape_cast %29 : vector<1x64x1xf32> to vector<64x1xf32>
    %cst_20 = arith.constant 0.000000e+00 : f32
    %31 = vector.broadcast %cst_20 : f32 to vector<64x1xf32>
    %32 = arith.cmpf oeq, %30, %31 : vector<64x1xf32>
    %cst_21 = arith.constant 1.000000e+00 : f32
    %33 = vector.broadcast %cst_21 : f32 to vector<64x1xf32>
    %34 = arith.select %32, %33, %30 : vector<64x1xi1>, vector<64x1xf32>
    %cst_22 = arith.constant 1.000000e+00 : f32
    %35 = vector.broadcast %cst_22 : f32 to vector<64x1xf32>
    %36 = arith.cmpf ogt, %34, %35 : vector<64x1xf32>
    %cst_23 = arith.constant 1.000000e+00 : f32
    %37 = vector.broadcast %cst_23 : f32 to vector<64x1xf32>
    %38 = arith.subf %34, %37 : vector<64x1xf32>
    %39 = arith.select %36, %38, %34 : vector<64x1xi1>, vector<64x1xf32>
    %cst_24 = arith.constant 0.000000e+00 : f32
    %cst_25 = arith.constant 4.000000e+00 : f32
    %40 = vector.broadcast %cst_24 : f32 to vector<64x1xf32>
    %41 = arith.maximumf %40, %39 : vector<64x1xf32>
    %42 = vector.broadcast %cst_25 : f32 to vector<64x1xf32>
    %43 = arith.minimumf %42, %41 : vector<64x1xf32>
    %44 = tpu.reciprocal %43 {approx = true} : vector<64x1xf32> -> vector<64x1xf32>
    %c0_26 = arith.constant 0 : index
    %c0_27 = arith.constant 0 : index
    %45 = vector.load %arg5[%c0_26, %c0_27] : memref<1x8xf32, #tpu.memory_space<vmem>>, vector<1x8xf32>
    %46 = vector.broadcast %30 : vector<64x1xf32> to vector<64x8xf32>
    %47 = vector.broadcast %45 : vector<1x8xf32> to vector<64x8xf32>
    %48 = arith.mulf %46, %47 : vector<64x8xf32>
    %49 = vector.broadcast %44 : vector<64x1xf32> to vector<64x8xf32>
    %50 = arith.mulf %28, %49 : vector<64x8xf32>
    %51 = arith.addf %48, %50 : vector<64x8xf32>
    %52 = vector.extract_strided_slice %3 {offsets = [1, 1], sizes = [8, 8], strides = [1, 1]} : vector<9x9xf32> to vector<8x8xf32>
    %53 = vector.shape_cast %52 : vector<8x8xf32> to vector<8x8x1xf32>
    %54 = vector.shape_cast %51 : vector<64x8xf32> to vector<8x8x8xf32>
    %55 = vector.broadcast %53 : vector<8x8x1xf32> to vector<8x8x8xf32>
    %56 = arith.addf %55, %54 : vector<8x8x8xf32>
    %c0_28 = arith.constant 0 : index
    %c1 = arith.constant 1 : index
    %c1_29 = arith.constant 1 : index
    %c0_30 = arith.constant 0 : index
    %57 = vector.load %arg7[%c0_28, %c1, %c1_29, %c0_30] : memref<1x9x9x8xf32, #tpu.memory_space<vmem>>, vector<1x8x8x8xf32>
    %58 = vector.shape_cast %57 : vector<1x8x8x8xf32> to vector<8x8x8xf32>
    %59 = vector.shape_cast %56 : vector<8x8x8xf32> to vector<1x8x8x8xf32>
    tpu.vector_store %arg7[%c0_28, %c1, %c1_29, %c0_30], %59 {strides = array<i32>} : memref<1x9x9x8xf32, #tpu.memory_space<vmem>>, vector<1x8x8x8xf32>,
    return
  }
  func.func @transform_0(%arg0: i32) -> (i32, i32, i32) {
    %c0_i32 = arith.constant 0 : i32
    %c0_i32_0 = arith.constant 0 : i32
    %c0_i32_1 = arith.constant 0 : i32
    return %arg0, %c0_i32, %c0_i32_0 : i32, i32, i32
  }
  func.func @transform_1(%arg0: i32) -> (i32, i32, i32) {
    %c0_i32 = arith.constant 0 : i32
    %c0_i32_0 = arith.constant 0 : i32
    %c0_i32_1 = arith.constant 0 : i32
    return %arg0, %c0_i32, %c0_i32_0 : i32, i32, i32
  }
  func.func @transform_2(%arg0: i32) -> (i32, i32, i32) {
    %c0_i32 = arith.constant 0 : i32
    %c0_i32_0 = arith.constant 0 : i32
    %c0_i32_1 = arith.constant 0 : i32
    return %arg0, %c0_i32, %c0_i32_0 : i32, i32, i32
  }
  func.func @transform_3(%arg0: i32) -> (i32, i32) {
    %c0_i32 = arith.constant 0 : i32
    %c0_i32_0 = arith.constant 0 : i32
    %c0_i32_1 = arith.constant 0 : i32
    return %c0_i32, %c0_i32_0 : i32, i32
  }
  func.func @transform_4(%arg0: i32) -> (i32, i32) {
    %c0_i32 = arith.constant 0 : i32
    %c0_i32_0 = arith.constant 0 : i32
    %c0_i32_1 = arith.constant 0 : i32
    return %c0_i32, %c0_i32_0 : i32, i32
  }
  func.func @transform_5(%arg0: i32) -> (i32, i32) {
    %c0_i32 = arith.constant 0 : i32
    %c0_i32_0 = arith.constant 0 : i32
    %c0_i32_1 = arith.constant 0 : i32
    return %c0_i32, %c0_i32_0 : i32, i32
  }
  func.func @transform_6(%arg0: i32) -> (i32, i32, i32, i32) {
    %c0_i32 = arith.constant 0 : i32
    %c0_i32_0 = arith.constant 0 : i32
    %c0_i32_1 = arith.constant 0 : i32
    %c0_i32_2 = arith.constant 0 : i32
    return %arg0, %c0_i32, %c0_i32_0, %c0_i32_1 : i32, i32, i32, i32
  }
}

</mosaic_0001>

<llo_original>
// kernel: graph_attn_bias_forward.1
$region0: #{graph_attn_bias_forward.1}
  #allocation0 [shape = 'u32[]', space=smem, size = 0x4, offset = 0x4, fixed_abs, tag = 'smem constant byte address 0x4 - core index']
  #allocation1 [shape = 'u32[72,128]{1,0:T(1,128)}', space=vmem, size = 0x9000, scoped, tag = 'internal scratch']
  %s0 = inlined_call_operand.vmem [shape: f32[2,9,9], index: 0, kind: input, shape index: {}]
  %s1 = inlined_call_operand.vmem [shape: f32[2,64,1], index: 1, kind: input, shape index: {}]
  %s2 = inlined_call_operand.vmem [shape: bf16[2,64,48], index: 2, kind: input, shape index: {}]
  %s3 = inlined_call_operand.vmem [shape: bf16[48,8], index: 3, kind: input, shape index: {}]
  %s4 = inlined_call_operand.vmem [shape: f32[1,8], index: 4, kind: input, shape index: {}]
  %s5 = inlined_call_operand.vmem [shape: f32[1,8], index: 5, kind: input, shape index: {}]
  %s6 = inlined_call_operand.vmem [shape: f32[2,9,9,8], index: 6, kind: output, shape index: {}]
  %s7 = sld [smem:[#allocation0]]
  $region57: #{graph_attn_bias_forward.1} parent=0
    _
  %s9 = ssub.s32 1, %s7
  %s10 = scalar_select 0, %s9, %s7
  loop: start=0, step=1, limit=4
  $region2: #{graph_attn_bias_forward.1} parent=0 // loop_pre_header
    _
  $region3: #{graph_attn_bias_forward.1} parent=0 // loop_header
    %s12 = sphi 0, %s16
    %p13 = scmp.ge.s32.totalorder %s12, 4
    %s22 = sphi 0, %s24
    %s25 = sphi 0, %s22
    %s26 = sphi 0, %s25
    %s42 = sphi 0, %s26
    %s48 = sphi 0, %s50
    %s51 = sphi 0, %s48
    %s52 = sphi 0, %s51
    %s68 = sphi 0, %s52
    %s74 = sphi 0, %s76
    %s77 = sphi 0, %s74
    %s78 = sphi 0, %s77
    %s94 = sphi 0, %s78
    %s98 = sphi 0, %s98
    %s100 = sphi 0, %s98
    %s101 = sphi 0, %s100
    %s115 = sphi 0, %s101
    %s119 = sphi 0, %s119
    %s121 = sphi 0, %s119
    %s122 = sphi 0, %s121
    %s136 = sphi 0, %s122
    %s140 = sphi 0, %s140
    %s142 = sphi 0, %s140
    %s143 = sphi 0, %s142
    %s157 = sphi 0, %s143
    %s163 = sphi 0, %s165
    %s166 = sphi 0, %s163
    %s167 = sphi 0, %s166
    %s183 = sphi 0, %s167
  $region4: #{graph_attn_bias_forward.1} parent=0 // loop_header_branch
    %15 = sbr.rel (%p13) target = $region8
  $region5: #{graph_attn_bias_forward.1} parent=0 // loop_body
    %s17 = ssub.s32 %s12, 1
    %s18 = ssub.s32 %s12, 2
    %s19 = sadd.s32 %s12, 1
    %s20 = ssub.s32 %s12, %s19
    %p21 = scmp.eq.s32.totalorder %s20, 0
    %s23 = sadd.s32 %s22, 1
    %s24 = scalar_select %p21, %s22, %s23
    %p27 = pneg %p21
    %p28 = scmp.eq.s32.totalorder %s12, 1
    %p29 = por %p27, %p28
    %p30 = scmp.ne.s32.totalorder %s22, %s25
    %p31 = scmp.eq.s32.totalorder %s12, 0
    %p32 = por %p30, %p31
    %p33 = scmp.ne.s32.totalorder %s22, %s25
    %p34 = scmp.eq.s32.totalorder %s17, 1
    %p35 = por %p33, %p34
    %p36 = scmp.ne.s32.totalorder %s25, %s26
    %p37 = scmp.eq.s32.totalorder %s17, 0
    %p38 = por %p36, %p37
    %p39 = scmp.ne.s32.totalorder %s25, %s26
    %p40 = scmp.eq.s32.totalorder %s18, 1
    %p41 = por %p39, %p40
    %p43 = scmp.ne.s32.totalorder %s26, %s42
    %p44 = scmp.eq.s32.totalorder %s18, 0
    %p45 = por %p43, %p44
    %s46 = ssub.s32 %s12, %s19
    %p47 = scmp.eq.s32.totalorder %s46, 0
    %s49 = sadd.s32 %s48, 1
    %s50 = scalar_select %p47, %s48, %s49
    %p53 = pneg %p47
    %p54 = scmp.eq.s32.totalorder %s12, 1
    %p55 = por %p53, %p54
    %p56 = scmp.ne.s32.totalorder %s48, %s51
    %p57 = scmp.eq.s32.totalorder %s12, 0
    %p58 = por %p56, %p57
    %p59 = scmp.ne.s32.totalorder %s48, %s51
    %p60 = scmp.eq.s32.totalorder %s17, 1
    %p61 = por %p59, %p60
    %p62 = scmp.ne.s32.totalorder %s51, %s52
    %p63 = scmp.eq.s32.totalorder %s17, 0
    %p64 = por %p62, %p63
    %p65 = scmp.ne.s32.totalorder %s51, %s52
    %p66 = scmp.eq.s32.totalorder %s18, 1
    %p67 = por %p65, %p66
    %p69 = scmp.ne.s32.totalorder %s52, %s68
    %p70 = scmp.eq.s32.totalorder %s18, 0
    %p71 = por %p69, %p70
    %s72 = ssub.s32 %s12, %s19
    %p73 = scmp.eq.s32.totalorder %s72, 0
    %s75 = sadd.s32 %s74, 1
    %s76 = scalar_select %p73, %s74, %s75
    %p79 = pneg %p73
    %p80 = scmp.eq.s32.totalorder %s12, 1
    %p81 = por %p79, %p80
    %p82 = scmp.ne.s32.totalorder %s74, %s77
    %p83 = scmp.eq.s32.totalorder %s12, 0
    %p84 = por %p82, %p83
    %p85 = scmp.ne.s32.totalorder %s74, %s77
    %p86 = scmp.eq.s32.totalorder %s17, 1
    %p87 = por %p85, %p86
    %p88 = scmp.ne.s32.totalorder %s77, %s78
    %p89 = scmp.eq.s32.totalorder %s17, 0
    %p90 = por %p88, %p89
    %p91 = scmp.ne.s32.totalorder %s77, %s78
    %p92 = scmp.eq.s32.totalorder %s18, 1
    %p93 = por %p91, %p92
    %p95 = scmp.ne.s32.totalorder %s78, %s94
    %p96 = scmp.eq.s32.totalorder %s18, 0
    %p97 = por %p95, %p96
    %s99 = sadd.s32 %s98, 1
    %p102 = scmp.eq.s32.totalorder %s12, 1
    %p103 = scmp.ne.s32.totalorder %s98, %s100
    %p104 = scmp.eq.s32.totalorder %s12, 0
    %p105 = por %p103, %p104
    %p106 = scmp.ne.s32.totalorder %s98, %s100
    %p107 = scmp.eq.s32.totalorder %s17, 1
    %p108 = por %p106, %p107
    %p109 = scmp.ne.s32.totalorder %s100, %s101
    %p110 = scmp.eq.s32.totalorder %s17, 0
    %p111 = por %p109, %p110
    %p112 = scmp.ne.s32.totalorder %s100, %s101
    %p113 = scmp.eq.s32.totalorder %s18, 1
    %p114 = por %p112, %p113
    %p116 = scmp.ne.s32.totalorder %s101, %s115
    %p117 = scmp.eq.s32.totalorder %s18, 0
    %p118 = por %p116, %p117
    %s120 = sadd.s32 %s119, 1
    %p123 = scmp.eq.s32.totalorder %s12, 1
    %p124 = scmp.ne.s32.totalorder %s119, %s121
    %p125 = scmp.eq.s32.totalorder %s12, 0
    %p126 = por %p124, %p125
    %p127 = scmp.ne.s32.totalorder %s119, %s121
    %p128 = scmp.eq.s32.totalorder %s17, 1
    %p129 = por %p127, %p128
    %p130 = scmp.ne.s32.totalorder %s121, %s122
    %p131 = scmp.eq.s32.totalorder %s17, 0
    %p132 = por %p130, %p131
    %p133 = scmp.ne.s32.totalorder %s121, %s122
    %p134 = scmp.eq.s32.totalorder %s18, 1
    %p135 = por %p133, %p134
    %p137 = scmp.ne.s32.totalorder %s122, %s136
    %p138 = scmp.eq.s32.totalorder %s18, 0
    %p139 = por %p137, %p138
    %s141 = sadd.s32 %s140, 1
    %p144 = scmp.eq.s32.totalorder %s12, 1
    %p145 = scmp.ne.s32.totalorder %s140, %s142
    %p146 = scmp.eq.s32.totalorder %s12, 0
    %p147 = por %p145, %p146
    %p148 = scmp.ne.s32.totalorder %s140, %s142
    %p149 = scmp.eq.s32.totalorder %s17, 1
    %p150 = por %p148, %p149
    %p151 = scmp.ne.s32.totalorder %s142, %s143
    %p152 = scmp.eq.s32.totalorder %s17, 0
    %p153 = por %p151, %p152
    %p154 = scmp.ne.s32.totalorder %s142, %s143
    %p155 = scmp.eq.s32.totalorder %s18, 1
    %p156 = por %p154, %p155
    %p158 = scmp.ne.s32.totalorder %s143, %s157
    %p159 = scmp.eq.s32.totalorder %s18, 0
    %p160 = por %p158, %p159
    %s161 = ssub.s32 %s12, %s19
    %p162 = scmp.eq.s32.totalorder %s161, 0
    %s164 = sadd.s32 %s163, 1
    %s165 = scalar_select %p162, %s163, %s164
    %p168 = pneg %p162
    %p169 = scmp.eq.s32.totalorder %s12, 1
    %p170 = por %p168, %p169
    %p171 = scmp.ne.s32.totalorder %s163, %s166
    %p172 = scmp.eq.s32.totalorder %s12, 0
    %p173 = por %p171, %p172
    %p174 = scmp.ne.s32.totalorder %s163, %s166
    %p175 = scmp.eq.s32.totalorder %s17, 1
    %p176 = por %p174, %p175
    %p177 = scmp.ne.s32.totalorder %s166, %s167
    %p178 = scmp.eq.s32.totalorder %s17, 0
    %p179 = por %p177, %p178
    %p180 = scmp.ne.s32.totalorder %s166, %s167
    %p181 = scmp.eq.s32.totalorder %s18, 1
    %p182 = por %p180, %p181
    %p184 = scmp.ne.s32.totalorder %s167, %s183
    %p185 = scmp.eq.s32.totalorder %s18, 0
    %p186 = por %p184, %p185
    %p187 = scmp.le.s32.totalorder 1, %s12
    %p188 = scmp.lt.s32.totalorder %s12, 3
    %p189 = pnand %p187, %p188
    %p190 = pneg %p189
    // Predicated region
    $region9: #{graph_attn_bias_forward.1} parent=5 // pred_check
      _
    $region10: #{graph_attn_bias_forward.1} parent=5 // pred_check_branch
      %192 = sbr.rel (%p189) target = $region12
    $region11: #{graph_attn_bias_forward.1} parent=5 // pred_region
      %s193 = ssub.s32 %s12, 1
      // Predicated region
      $region13: #{graph_attn_bias_forward.1} parent=11 // pred_check
        %p194 = pneg %p111
      $region14: #{graph_attn_bias_forward.1} parent=11 // pred_check_branch
        %196 = sbr.rel (%p194) target = $region16
      $region15: #{graph_attn_bias_forward.1} parent=11 // pred_region
        _
      $region16: #{graph_attn_bias_forward.1} parent=11 // pred_fallthru
        _
      // Predicated region
      $region17: #{graph_attn_bias_forward.1} parent=11 // pred_check
        %p197 = pneg %p132
      $region18: #{graph_attn_bias_forward.1} parent=11 // pred_check_branch
        %199 = sbr.rel (%p197) target = $region20
      $region19: #{graph_attn_bias_forward.1} parent=11 // pred_region
        _
      $region20: #{graph_attn_bias_forward.1} parent=11 // pred_fallthru
        _
      // Predicated region
      $region21: #{graph_attn_bias_forward.1} parent=11 // pred_check
        %p200 = pneg %p153
      $region22: #{graph_attn_bias_forward.1} parent=11 // pred_check_branch
        %202 = sbr.rel (%p200) target = $region24
      $region23: #{graph_attn_bias_forward.1} parent=11 // pred_region
        _
      $region24: #{graph_attn_bias_forward.1} parent=11 // pred_fallthru
        _
    $region12: #{graph_attn_bias_forward.1} parent=5 // pred_fallthru
      _
    %p203 = scmp.lt.s32.totalorder %s12, 2
    // Predicated region
    $region25: #{graph_attn_bias_forward.1} parent=5 // pred_check
      %p204 = pneg %p203
    $region26: #{graph_attn_bias_forward.1} parent=5 // pred_check_branch
      %206 = sbr.rel (%p204) target = $region28
    $region27: #{graph_attn_bias_forward.1} parent=5 // pred_region
      // Predicated region
      $region29: #{graph_attn_bias_forward.1} parent=27 // pred_check
        %p207 = pneg %p32
      $region30: #{graph_attn_bias_forward.1} parent=27 // pred_check_branch
        %209 = sbr.rel (%p207) target = $region32
      $region31: #{graph_attn_bias_forward.1} parent=27 // pred_region
        %p210 = scmp.lt.s32.totalorder %s12, 1
        %s211 = scalar_select %p210, %s12, 1
        %s212 = smul.addr %s211, 2
        %s213 = smul.addr %s212, 8
        %s214 = scalar_lea.vmem %s0, %s213
      $region32: #{graph_attn_bias_forward.1} parent=27 // pred_fallthru
        _
      // Predicated region
      $region33: #{graph_attn_bias_forward.1} parent=27 // pred_check
        %p215 = pneg %p58
      $region34: #{graph_attn_bias_forward.1} parent=27 // pred_check_branch
        %217 = sbr.rel (%p215) target = $region36
      $region35: #{graph_attn_bias_forward.1} parent=27 // pred_region
        %p218 = scmp.lt.s32.totalorder %s12, 1
        %s219 = scalar_select %p218, %s12, 1
        %s220 = smul.addr %s219, 8
        %s221 = smul.addr %s220, 8
        %s222 = scalar_lea.vmem %s1, %s221
      $region36: #{graph_attn_bias_forward.1} parent=27 // pred_fallthru
        _
      // Predicated region
      $region37: #{graph_attn_bias_forward.1} parent=27 // pred_check
        %p223 = pneg %p84
      $region38: #{graph_attn_bias_forward.1} parent=27 // pred_check_branch
        %225 = sbr.rel (%p223) target = $region40
      $region39: #{graph_attn_bias_forward.1} parent=27 // pred_region
        %p226 = scmp.lt.s32.totalorder %s12, 1
        %s227 = scalar_select %p226, %s12, 1
        %s228 = smul.addr %s227, 8
        %s229 = smul.addr %s228, 4
        %s230 = scalar_lea.vmem %s2, %s229
      $region40: #{graph_attn_bias_forward.1} parent=27 // pred_fallthru
        _
    $region28: #{graph_attn_bias_forward.1} parent=5 // pred_fallthru
      _
    %p231 = scmp.le.s32.totalorder 1, %s12
    %p232 = scmp.lt.s32.totalorder %s12, 3
    %p233 = pnand %p231, %p232
    %p234 = pneg %p233
    // Predicated region
    $region41: #{graph_attn_bias_forward.1} parent=5 // pred_check
      _
    $region42: #{graph_attn_bias_forward.1} parent=5 // pred_check_branch
      %236 = sbr.rel (%p233) target = $region44
    $region43: #{graph_attn_bias_forward.1} parent=5 // pred_region
      %s237 = ssub.s32 %s12, 1
      %p238 = scmp.lt.s32.totalorder %s17, 1
      %s239 = scalar_select %p238, %s17, 1
      %s240 = smul.addr %s239, 2
      %s241 = smul.addr %s240, 8
      %s242 = scalar_lea.vmem %s0, %s241
      %p243 = pneg %p38
      %p244 = pneg %p35
      %p245 = scmp.lt.s32.totalorder %s17, 1
      %s246 = scalar_select %p245, %s17, 1
      %s247 = smul.addr %s246, 8
      %s248 = smul.addr %s247, 8
      %s249 = scalar_lea.vmem %s1, %s248
      %p250 = pneg %p64
      %p251 = pneg %p61
      %p252 = scmp.lt.s32.totalorder %s17, 1
      %s253 = scalar_select %p252, %s17, 1
      %s254 = smul.addr %s253, 8
      %s255 = smul.addr %s254, 4
      %s256 = scalar_lea.vmem %s2, %s255
      %p257 = pneg %p90
      %p258 = pneg %p87
      %p259 = pneg %p111
      %p260 = pneg %p108
      %p261 = pneg %p132
      %p262 = pneg %p129
      %p263 = pneg %p153
      %p264 = pneg %p150
      %p265 = pneg %p179
      %p266 = pneg %p176
      %p267 = scmp.lt.s32.totalorder %s17, 1
      %s268 = scalar_select %p267, %s17, 1
      %s269 = smul.addr %s268, 18
      %s270 = smul.addr %s269, 8
      %s271 = scalar_lea.vmem %s6, %s270
      %p272 = scmp.lt.s32.totalorder %s17, 1
      %s273 = scalar_select %p272, %s17, 1
      %s274 = smul.addr %s273, 2
      %s275 = smul.addr %s274, 8
      %s276 = scalar_lea.vmem %s0, %s275
      %p277 = scmp.lt.s32.totalorder %s17, 1
      %s278 = scalar_select %p277, %s17, 1
      %s279 = smul.addr %s278, 8
      %s280 = smul.addr %s279, 8
      %s281 = scalar_lea.vmem %s1, %s280
      %p282 = scmp.lt.s32.totalorder %s17, 1
      %s283 = scalar_select %p282, %s17, 1
      %s284 = smul.addr %s283, 8
      %s285 = smul.addr %s284, 4
      %s286 = scalar_lea.vmem %s2, %s285
      %p287 = scmp.lt.s32.totalorder %s17, 1
      %s288 = scalar_select %p287, %s17, 1
      %s289 = smul.addr %s288, 18
      %s290 = smul.addr %s289, 8
      %s291 = scalar_lea.vmem %s6, %s290
      %v293 = vld [vmem:[%s276] sm:$0xff]
      %v294 = vld [vmem:[%s276 + $0x8] sm:$0x1]
      %v295 = vmul.f32 %v293, 2.0
      %v296 = vmul.f32 %v294, 2.0
      %v297 = vlaneseq
      %v298 = vshrl.u32 %v297, 7
      %v299 = vadd.s32 %v298, 8
      %v300 = vlaneseq
      %v301 = vand.u32 %v300, 127
      %vm302 = vcmp.eq.s32.totalorder %v298, 0
      %vm303 = vcmp.eq.s32.totalorder %v299, 0
      %vm304 = vcmp.eq.s32.totalorder %v301, 0
      %vm305 = vmor %vm302, %vm304
      %vm306 = vmor %vm303, %vm304
      %v307 = vsel %vm305, 1.0, 0.0
      %v308 = vsel %vm306, 1.0, 0.0
      %v309 = vld [vmem:[%s5] sm:$0x1]
      %v310 = vperm.slane %v295, 0
      %v311 = vlaneseq
      %v312 = vshrl.u32 %v311, 7
      %314 = vset.pattern.permute.xlu0 %v312
      %315 = vperm.xlu0 %314, %v310
      %v316 = vpop.permute.xlu0 %315
      %v317 = vlaneseq
      %v318 = vshrl.u32 %v317, 7
      %v319 = vadd.s32 %v318, 8
      %320 = vset.pattern.permute.xlu0 %v319
      %321 = vperm.xlu0 %320, %v310
      %v322 = vpop.permute.xlu0 %321
      %v323 = vperm.slane %v295, 1
      %v324 = vlaneseq
      %v325 = vshrl.u32 %v324, 7
      %327 = vset.pattern.permute.xlu0 %v325
      %328 = vperm.xlu0 %327, %v323
      %v329 = vpop.permute.xlu0 %328
      %v330 = vlaneseq
      %v331 = vshrl.u32 %v330, 7
      %v332 = vadd.s32 %v331, 8
      %333 = vset.pattern.permute.xlu0 %v332
      %334 = vperm.xlu0 %333, %v323
      %v335 = vpop.permute.xlu0 %334
      %v336 = vperm.slane %v295, 2
      %v337 = vlaneseq
      %v338 = vshrl.u32 %v337, 7
      %340 = vset.pattern.permute.xlu0 %v338
      %341 = vperm.xlu0 %340, %v336
      %v342 = vpop.permute.xlu0 %341
      %v343 = vlaneseq
      %v344 = vshrl.u32 %v343, 7
      %v345 = vadd.s32 %v344, 8
      %346 = vset.pattern.permute.xlu0 %v345
      %347 = vperm.xlu0 %346, %v336
      %v348 = vpop.permute.xlu0 %347
      %v349 = vperm.slane %v295, 3
      %v350 = vlaneseq
      %v351 = vshrl.u32 %v350, 7
      %353 = vset.pattern.permute.xlu0 %v351
      %354 = vperm.xlu0 %353, %v349
      %v355 = vpop.permute.xlu0 %354
      %v356 = vlaneseq
      %v357 = vshrl.u32 %v356, 7
      %v358 = vadd.s32 %v357, 8
      %359 = vset.pattern.permute.xlu0 %v358
      %360 = vperm.xlu0 %359, %v349
      %v361 = vpop.permute.xlu0 %360
      %v362 = vperm.slane %v295, 4
      %v363 = vlaneseq
      %v364 = vshrl.u32 %v363, 7
      %366 = vset.pattern.permute.xlu0 %v364
      %367 = vperm.xlu0 %366, %v362
      %v368 = vpop.permute.xlu0 %367
      %v369 = vlaneseq
      %v370 = vshrl.u32 %v369, 7
      %v371 = vadd.s32 %v370, 8
      %372 = vset.pattern.permute.xlu0 %v371
      %373 = vperm.xlu0 %372, %v362
      %v374 = vpop.permute.xlu0 %373
      %v375 = vperm.slane %v295, 5
      %v376 = vlaneseq
      %v377 = vshrl.u32 %v376, 7
      %379 = vset.pattern.permute.xlu0 %v377
      %380 = vperm.xlu0 %379, %v375
      %v381 = vpop.permute.xlu0 %380
      %v382 = vlaneseq
      %v383 = vshrl.u32 %v382, 7
      %v384 = vadd.s32 %v383, 8
      %385 = vset.pattern.permute.xlu0 %v384
      %386 = vperm.xlu0 %385, %v375
      %v387 = vpop.permute.xlu0 %386
      %v388 = vperm.slane %v295, 6
      %v389 = vlaneseq
      %v390 = vshrl.u32 %v389, 7
      %392 = vset.pattern.permute.xlu0 %v390
      %393 = vperm.xlu0 %392, %v388
      %v394 = vpop.permute.xlu0 %393
      %v395 = vlaneseq
      %v396 = vshrl.u32 %v395, 7
      %v397 = vadd.s32 %v396, 8
      %398 = vset.pattern.permute.xlu0 %v397
      %399 = vperm.xlu0 %398, %v388
      %v400 = vpop.permute.xlu0 %399
      %v401 = vperm.slane %v295, 7
      %v402 = vlaneseq
      %v403 = vshrl.u32 %v402, 7
      %405 = vset.pattern.permute.xlu0 %v403
      %406 = vperm.xlu0 %405, %v401
      %v407 = vpop.permute.xlu0 %406
      %v408 = vlaneseq
      %v409 = vshrl.u32 %v408, 7
      %v410 = vadd.s32 %v409, 8
      %411 = vset.pattern.permute.xlu0 %v410
      %412 = vperm.xlu0 %411, %v401
      %v413 = vpop.permute.xlu0 %412
      %v414 = vperm.slane %v296, 0
      %v415 = vlaneseq
      %v416 = vshrl.u32 %v415, 7
      %418 = vset.pattern.permute.xlu0 %v416
      %419 = vperm.xlu0 %418, %v414
      %v420 = vpop.permute.xlu0 %419
      %v421 = vlaneseq
      %v422 = vshrl.u32 %v421, 7
      %v423 = vadd.s32 %v422, 8
      %424 = vset.pattern.permute.xlu0 %v423
      %425 = vperm.xlu0 %424, %v414
      %v426 = vpop.permute.xlu0 %425
      %v427 = vperm.slane %v307, 0
      %v428 = vlaneseq
      %v429 = vshrl.u32 %v428, 7
      %431 = vset.pattern.permute.xlu0 %v429
      %432 = vperm.xlu0 %431, %v427
      %v433 = vpop.permute.xlu0 %432
      %v434 = vlaneseq
      %v435 = vshrl.u32 %v434, 7
      %v436 = vadd.s32 %v435, 8
      %437 = vset.pattern.permute.xlu0 %v436
      %438 = vperm.xlu0 %437, %v427
      %v439 = vpop.permute.xlu0 %438
      %v440 = vperm.slane %v307, 1
      %v441 = vlaneseq
      %v442 = vshrl.u32 %v441, 7
      %444 = vset.pattern.permute.xlu0 %v442
      %445 = vperm.xlu0 %444, %v440
      %v446 = vpop.permute.xlu0 %445
      %v447 = vlaneseq
      %v448 = vshrl.u32 %v447, 7
      %v449 = vadd.s32 %v448, 8
      %450 = vset.pattern.permute.xlu0 %v449
      %451 = vperm.xlu0 %450, %v440
      %v452 = vpop.permute.xlu0 %451
      %v453 = vperm.slane %v307, 2
      %v454 = vlaneseq
      %v455 = vshrl.u32 %v454, 7
      %457 = vset.pattern.permute.xlu0 %v455
      %458 = vperm.xlu0 %457, %v453
      %v459 = vpop.permute.xlu0 %458
      %v460 = vlaneseq
      %v461 = vshrl.u32 %v460, 7
      %v462 = vadd.s32 %v461, 8
      %463 = vset.pattern.permute.xlu0 %v462
      %464 = vperm.xlu0 %463, %v453
      %v465 = vpop.permute.xlu0 %464
      %v466 = vperm.slane %v307, 3
      %v467 = vlaneseq
      %v468 = vshrl.u32 %v467, 7
      %470 = vset.pattern.permute.xlu0 %v468
      %471 = vperm.xlu0 %470, %v466
      %v472 = vpop.permute.xlu0 %471
      %v473 = vlaneseq
      %v474 = vshrl.u32 %v473, 7
      %v475 = vadd.s32 %v474, 8
      %476 = vset.pattern.permute.xlu0 %v475
      %477 = vperm.xlu0 %476, %v466
      %v478 = vpop.permute.xlu0 %477
      %v479 = vperm.slane %v307, 4
      %v480 = vlaneseq
      %v481 = vshrl.u32 %v480, 7
      %483 = vset.pattern.permute.xlu0 %v481
      %484 = vperm.xlu0 %483, %v479
      %v485 = vpop.permute.xlu0 %484
      %v486 = vlaneseq
      %v487 = vshrl.u32 %v486, 7
      %v488 = vadd.s32 %v487, 8
      %489 = vset.pattern.permute.xlu0 %v488
      %490 = vperm.xlu0 %489, %v479
      %v491 = vpop.permute.xlu0 %490
      %v492 = vperm.slane %v307, 5
      %v493 = vlaneseq
      %v494 = vshrl.u32 %v493, 7
      %496 = vset.pattern.permute.xlu0 %v494
      %497 = vperm.xlu0 %496, %v492
      %v498 = vpop.permute.xlu0 %497
      %v499 = vlaneseq
      %v500 = vshrl.u32 %v499, 7
      %v501 = vadd.s32 %v500, 8
      %502 = vset.pattern.permute.xlu0 %v501
      %503 = vperm.xlu0 %502, %v492
      %v504 = vpop.permute.xlu0 %503
      %v505 = vperm.slane %v307, 6
      %v506 = vlaneseq
      %v507 = vshrl.u32 %v506, 7
      %509 = vset.pattern.permute.xlu0 %v507
      %510 = vperm.xlu0 %509, %v505
      %v511 = vpop.permute.xlu0 %510
      %v512 = vlaneseq
      %v513 = vshrl.u32 %v512, 7
      %v514 = vadd.s32 %v513, 8
      %515 = vset.pattern.permute.xlu0 %v514
      %516 = vperm.xlu0 %515, %v505
      %v517 = vpop.permute.xlu0 %516
      %v518 = vperm.slane %v307, 7
      %v519 = vlaneseq
      %v520 = vshrl.u32 %v519, 7
      %522 = vset.pattern.permute.xlu0 %v520
      %523 = vperm.xlu0 %522, %v518
      %v524 = vpop.permute.xlu0 %523
      %v525 = vlaneseq
      %v526 = vshrl.u32 %v525, 7
      %v527 = vadd.s32 %v526, 8
      %528 = vset.pattern.permute.xlu0 %v527
      %529 = vperm.xlu0 %528, %v518
      %v530 = vpop.permute.xlu0 %529
      %v531 = vperm.slane %v308, 0
      %v532 = vlaneseq
      %v533 = vshrl.u32 %v532, 7
      %535 = vset.pattern.permute.xlu0 %v533
      %536 = vperm.xlu0 %535, %v531
      %v537 = vpop.permute.xlu0 %536
      %v538 = vlaneseq
      %v539 = vshrl.u32 %v538, 7
      %v540 = vadd.s32 %v539, 8
      %541 = vset.pattern.permute.xlu0 %v540
      %542 = vperm.xlu0 %541, %v531
      %v543 = vpop.permute.xlu0 %542
      %v545 = vperm.slane %v309, 0
      %v547 = vmul.f32 %v433, %v545
      %v548 = vmul.f32 %v439, %v545
      %v549 = vmul.f32 %v446, %v545
      %v550 = vmul.f32 %v452, %v545
      %v551 = vmul.f32 %v459, %v545
      %v552 = vmul.f32 %v465, %v545
      %v553 = vmul.f32 %v472, %v545
      %v554 = vmul.f32 %v478, %v545
      %v555 = vmul.f32 %v485, %v545
      %v556 = vmul.f32 %v491, %v545
      %v557 = vmul.f32 %v498, %v545
      %v558 = vmul.f32 %v504, %v545
      %v559 = vmul.f32 %v511, %v545
      %v560 = vmul.f32 %v517, %v545
      %v561 = vmul.f32 %v524, %v545
      %v562 = vmul.f32 %v530, %v545
      %v563 = vmul.f32 %v537, %v545
      %v564 = vmul.f32 %v543, %v545
      %v565 = vadd.f32 %v316, %v547
      %v566 = vadd.f32 %v322, %v548
      %v567 = vadd.f32 %v329, %v549
      %v568 = vadd.f32 %v335, %v550
      %v569 = vadd.f32 %v342, %v551
      %v570 = vadd.f32 %v348, %v552
      %v571 = vadd.f32 %v355, %v553
      %v572 = vadd.f32 %v361, %v554
      %v573 = vadd.f32 %v368, %v555
      %v574 = vadd.f32 %v374, %v556
      %v575 = vadd.f32 %v381, %v557
      %v576 = vadd.f32 %v387, %v558
      %v577 = vadd.f32 %v394, %v559
      %v578 = vadd.f32 %v400, %v560
      %v579 = vadd.f32 %v407, %v561
      %v580 = vadd.f32 %v413, %v562
      %v581 = vadd.f32 %v420, %v563
      %v582 = vadd.f32 %v426, %v564
      %vm583 = vcmask 64512
      %584 = vst.msk [vmem:[%s291] sm:$0xff] %vm583, %v565
      %vm585 = vcmask 57344
      %586 = vst.msk [vmem:[%s291 + $0x8] sm:$0x1] %vm585, %v566
      %587 = vst.msk [vmem:[%s291 + $0x10] sm:$0xff] %vm583, %v567
      %588 = vst.msk [vmem:[%s291 + $0x18] sm:$0x1] %vm585, %v568
      %589 = vst.msk [vmem:[%s291 + $0x20] sm:$0xff] %vm583, %v569
      %590 = vst.msk [vmem:[%s291 + $0x28] sm:$0x1] %vm585, %v570
      %591 = vst.msk [vmem:[%s291 + $0x30] sm:$0xff] %vm583, %v571
      %592 = vst.msk [vmem:[%s291 + $0x38] sm:$0x1] %vm585, %v572
      %593 = vst.msk [vmem:[%s291 + $0x40] sm:$0xff] %vm583, %v573
      %594 = vst.msk [vmem:[%s291 + $0x48] sm:$0x1] %vm585, %v574
      %595 = vst.msk [vmem:[%s291 + $0x50] sm:$0xff] %vm583, %v575
      %596 = vst.msk [vmem:[%s291 + $0x58] sm:$0x1] %vm585, %v576
      %597 = vst.msk [vmem:[%s291 + $0x60] sm:$0xff] %vm583, %v577
      %598 = vst.msk [vmem:[%s291 + $0x68] sm:$0x1] %vm585, %v578
      %599 = vst.msk [vmem:[%s291 + $0x70] sm:$0xff] %vm583, %v579
      %600 = vst.msk [vmem:[%s291 + $0x78] sm:$0x1] %vm585, %v580
      %601 = vst.msk [vmem:[%s291 + $0x80] sm:$0xff] %vm583, %v581
      %602 = vst.msk [vmem:[%s291 + $0x88] sm:$0x1] %vm585, %v582
      %v603 = vld [vmem:[%s286] sm:$0xf]
      %v604 = vld [vmem:[%s286 + $0x4] sm:$0xf]
      %v605 = vld [vmem:[%s286 + $0x8] sm:$0xf]
      %v606 = vld [vmem:[%s286 + $0xc] sm:$0xf]
      %v607 = vld [vmem:[%s286 + $0x10] sm:$0xf]
      %v608 = vld [vmem:[%s286 + $0x14] sm:$0xf]
      %v609 = vld [vmem:[%s286 + $0x18] sm:$0xf]
      %v610 = vld [vmem:[%s286 + $0x1c] sm:$0xf]
      %v611 = vld [vmem:[%s3] sm:$0xf]
      %v612 = vld [vmem:[%s3 + $0x4] sm:$0xf]
      %v613 = vld [vmem:[%s3 + $0x8] sm:$0xf]
      %v614 = vld [vmem:[%s3 + $0xc] sm:$0xf]
      %v615 = vld [vmem:[%s3 + $0x10] sm:$0xf]
      %v616 = vld [vmem:[%s3 + $0x14] sm:$0xf]
      %v625 = vunpack.c.l.b16 %v603
      %v626 = vunpack.c.l.b16 %v604
      %v627 = vunpack.c.l.b16 %v605
      %v628 = vunpack.c.l.b16 %v606
      %v629 = vunpack.c.l.b16 %v607
      %v630 = vunpack.c.l.b16 %v608
      %v631 = vunpack.c.l.b16 %v609
      %v632 = vunpack.c.l.b16 %v610
      %v633 = vpack.c.b16 %v626, %v625
      %v634 = vpack.c.b16 %v628, %v627
      %v635 = vpack.c.b16 %v630, %v629
      %v636 = vpack.c.b16 %v632, %v631
      %v643 = vunpack.c.l.b16 %v611
      %v644 = vunpack.c.l.b16 %v612
      %v645 = vunpack.c.l.b16 %v613
      %v646 = vunpack.c.l.b16 %v614
      %v647 = vunpack.c.l.b16 %v615
      %v648 = vunpack.c.l.b16 %v616
      %v649 = vpack.c.b16 %v644, %v643
      %v650 = vpack.c.b16 %v646, %v645
      %v651 = vpack.c.b16 %v648, %v647
      %vm655 = vcmask 392192
      %v657 = vsel %vm655, %v633, 0
      %v660 = vsel %vm655, %v634, 0
      %v663 = vsel %vm655, %v635, 0
      %v666 = vsel %vm655, %v636, 0
      %668 = vmatpush.bf16.msra.mxu0 0
      %669 = vmatpush.bf16.msra.mxu0 0
      %670 = vmatpush.bf16.msra.mxu0 0
      %671 = vmatpush.bf16.msra.mxu0 0
      %672 = vmatpush.bf16.msra.mxu0 0
      %673 = vmatpush.bf16.msra.mxu0 %v651
      %674 = vmatpush.bf16.msra.mxu0 %v650
      %675 = vmatpush.bf16.msra.mxu0 %v649
      %676 = vmatmul.bf16.gmra.mxu0 %v657
      %v677 = vpop.f32.mrf.mxu0
      %v678 = vadd.f32 0.0, %v677
      %v679 = vpop.f32.mrf.mxu0
      %v680 = vadd.f32 0.0, %v679
      %681 = vmatmul.bf16.gmra.mxu0 %v660
      %v682 = vpop.f32.mrf.mxu0
      %v683 = vadd.f32 0.0, %v682
      %v684 = vpop.f32.mrf.mxu0
      %v685 = vadd.f32 0.0, %v684
      %686 = vmatmul.bf16.gmra.mxu0 %v663
      %v687 = vpop.f32.mrf.mxu0
      %v688 = vadd.f32 0.0, %v687
      %v689 = vpop.f32.mrf.mxu0
      %v690 = vadd.f32 0.0, %v689
      %691 = vmatmul.bf16.gmra.mxu0 %v666
      %v692 = vpop.f32.mrf.mxu0
      %v693 = vadd.f32 0.0, %v692
      %v694 = vpop.f32.mrf.mxu0
      %v695 = vadd.f32 0.0, %v694
      %696 = vdwg.mxu0
      %v697 = vld [vmem:[%s281] sm:$0xff]
      %v698 = vld [vmem:[%s281 + $0x8] sm:$0xff]
      %v699 = vld [vmem:[%s281 + $0x10] sm:$0xff]
      %v700 = vld [vmem:[%s281 + $0x18] sm:$0xff]
      %v701 = vld [vmem:[%s281 + $0x20] sm:$0xff]
      %v702 = vld [vmem:[%s281 + $0x28] sm:$0xff]
      %v703 = vld [vmem:[%s281 + $0x30] sm:$0xff]
      %v704 = vld [vmem:[%s281 + $0x38] sm:$0xff]
      %vm705 = vcmp.eq.f32.partialorder %v697, 0.0
      %vm706 = vcmp.eq.f32.partialorder %v698, 0.0
      %vm707 = vcmp.eq.f32.partialorder %v699, 0.0
      %vm708 = vcmp.eq.f32.partialorder %v700, 0.0
      %vm709 = vcmp.eq.f32.partialorder %v701, 0.0
      %vm710 = vcmp.eq.f32.partialorder %v702, 0.0
      %vm711 = vcmp.eq.f32.partialorder %v703, 0.0
      %vm712 = vcmp.eq.f32.partialorder %v704, 0.0
      %v713 = vsel %vm705, 1.0, %v697
      %v714 = vsel %vm706, 1.0, %v698
      %v715 = vsel %vm707, 1.0, %v699
      %v716 = vsel %vm708, 1.0, %v700
      %v717 = vsel %vm709, 1.0, %v701
      %v718 = vsel %vm710, 1.0, %v702
      %v719 = vsel %vm711, 1.0, %v703
      %v720 = vsel %vm712, 1.0, %v704
      %vm721 = vcmp.gt.f32.partialorder %v713, 1.0
      %vm722 = vcmp.gt.f32.partialorder %v714, 1.0
      %vm723 = vcmp.gt.f32.partialorder %v715, 1.0
      %vm724 = vcmp.gt.f32.partialorder %v716, 1.0
      %vm725 = vcmp.gt.f32.partialorder %v717, 1.0
      %vm726 = vcmp.gt.f32.partialorder %v718, 1.0
      %vm727 = vcmp.gt.f32.partialorder %v719, 1.0
      %vm728 = vcmp.gt.f32.partialorder %v720, 1.0
      %v729 = vsub.f32 %v713, 1.0
      %v730 = vsub.f32 %v714, 1.0
      %v731 = vsub.f32 %v715, 1.0
      %v732 = vsub.f32 %v716, 1.0
      %v733 = vsub.f32 %v717, 1.0
      %v734 = vsub.f32 %v718, 1.0
      %v735 = vsub.f32 %v719, 1.0
      %v736 = vsub.f32 %v720, 1.0
      %v737 = vsel %vm721, %v729, %v713
      %v738 = vsel %vm722, %v730, %v714
      %v739 = vsel %vm723, %v731, %v715
      %v740 = vsel %vm724, %v732, %v716
      %v741 = vsel %vm725, %v733, %v717
      %v742 = vsel %vm726, %v734, %v718
      %v743 = vsel %vm727, %v735, %v719
      %v744 = vsel %vm728, %v736, %v720
      %v745 = vmax.f32 %v737, 0.0
      %v746 = vmax.f32 %v738, 0.0
      %v747 = vmax.f32 %v739, 0.0
      %v748 = vmax.f32 %v740, 0.0
      %v749 = vmax.f32 %v741, 0.0
      %v750 = vmax.f32 %v742, 0.0
      %v751 = vmax.f32 %v743, 0.0
      %v752 = vmax.f32 %v744, 0.0
      %v753 = vmin.f32 %v745, 4.0
      %v754 = vmin.f32 %v746, 4.0
      %v755 = vmin.f32 %v747, 4.0
      %v756 = vmin.f32 %v748, 4.0
      %v757 = vmin.f32 %v749, 4.0
      %v758 = vmin.f32 %v750, 4.0
      %v759 = vmin.f32 %v751, 4.0
      %v760 = vmin.f32 %v752, 4.0
      %v761 = vrcp.pop %v753
      %v762 = vrcp.pop %v754
      %v763 = vrcp.pop %v755
      %v764 = vrcp.pop %v756
      %v765 = vrcp.pop %v757
      %v766 = vrcp.pop %v758
      %v767 = vrcp.pop %v759
      %v768 = vrcp.pop %v760
      %v769 = vld [vmem:[%s4] sm:$0x1]
      %771 = vset.pattern.permute.xlu0 0
      %772 = vperm.xlu0 %771, %v697
      %v773 = vpop.permute.xlu0 %772
      %776 = vset.pattern.permute.xlu0 0
      %777 = vperm.xlu0 %776, %v698
      %v778 = vpop.permute.xlu0 %777
      %781 = vset.pattern.permute.xlu0 0
      %782 = vperm.xlu0 %781, %v699
      %v783 = vpop.permute.xlu0 %782
      %786 = vset.pattern.permute.xlu0 0
      %787 = vperm.xlu0 %786, %v700
      %v788 = vpop.permute.xlu0 %787
      %791 = vset.pattern.permute.xlu0 0
      %792 = vperm.xlu0 %791, %v701
      %v793 = vpop.permute.xlu0 %792
      %796 = vset.pattern.permute.xlu0 0
      %797 = vperm.xlu0 %796, %v702
      %v798 = vpop.permute.xlu0 %797
      %801 = vset.pattern.permute.xlu0 0
      %802 = vperm.xlu0 %801, %v703
      %v803 = vpop.permute.xlu0 %802
      %806 = vset.pattern.permute.xlu0 0
      %807 = vperm.xlu0 %806, %v704
      %v808 = vpop.permute.xlu0 %807
      %v811 = vperm.slane %v769, 0
      %v813 = vmul.f32 %v773, %v811
      %v814 = vmul.f32 %v778, %v811
      %v815 = vmul.f32 %v783, %v811
      %v816 = vmul.f32 %v788, %v811
      %v817 = vmul.f32 %v793, %v811
      %v818 = vmul.f32 %v798, %v811
      %v819 = vmul.f32 %v803, %v811
      %v820 = vmul.f32 %v808, %v811
      %822 = vset.pattern.permute.xlu0 0
      %823 = vperm.xlu0 %822, %v761
      %v824 = vpop.permute.xlu0 %823
      %827 = vset.pattern.permute.xlu0 0
      %828 = vperm.xlu0 %827, %v762
      %v829 = vpop.permute.xlu0 %828
      %832 = vset.pattern.permute.xlu0 0
      %833 = vperm.xlu0 %832, %v763
      %v834 = vpop.permute.xlu0 %833
      %837 = vset.pattern.permute.xlu0 0
      %838 = vperm.xlu0 %837, %v764
      %v839 = vpop.permute.xlu0 %838
      %842 = vset.pattern.permute.xlu0 0
      %843 = vperm.xlu0 %842, %v765
      %v844 = vpop.permute.xlu0 %843
      %847 = vset.pattern.permute.xlu0 0
      %848 = vperm.xlu0 %847, %v766
      %v849 = vpop.permute.xlu0 %848
      %852 = vset.pattern.permute.xlu0 0
      %853 = vperm.xlu0 %852, %v767
      %v854 = vpop.permute.xlu0 %853
      %857 = vset.pattern.permute.xlu0 0
      %858 = vperm.xlu0 %857, %v768
      %v859 = vpop.permute.xlu0 %858
      %v861 = vmul.f32 %v678, %v824
      %v862 = vmul.f32 %v680, %v829
      %v863 = vmul.f32 %v683, %v834
      %v864 = vmul.f32 %v685, %v839
      %v865 = vmul.f32 %v688, %v844
      %v866 = vmul.f32 %v690, %v849
      %v867 = vmul.f32 %v693, %v854
      %v868 = vmul.f32 %v695, %v859
      %v869 = vadd.f32 %v813, %v861
      %v870 = vadd.f32 %v814, %v862
      %v871 = vadd.f32 %v815, %v863
      %v872 = vadd.f32 %v816, %v864
      %v873 = vadd.f32 %v817, %v865
      %v874 = vadd.f32 %v818, %v866
      %v875 = vadd.f32 %v819, %v867
      %v876 = vadd.f32 %v820, %v868
      %v877 = vlaneseq
      %v878 = vshrl.u32 %v877, 7
      %v879 = vadd.s32 %v878, 1
      %880 = vset.pattern.permute.xlu0 %v879
      %881 = vperm.xlu0 %880, %v323
      %v882 = vpop.permute.xlu0 %881
      %v883 = vlaneseq
      %v884 = vshrl.u32 %v883, 7
      %v885 = vadd.s32 %v884, 1
      %886 = vset.pattern.permute.xlu0 %v885
      %887 = vperm.xlu0 %886, %v336
      %v888 = vpop.permute.xlu0 %887
      %v889 = vlaneseq
      %v890 = vshrl.u32 %v889, 7
      %v891 = vadd.s32 %v890, 1
      %892 = vset.pattern.permute.xlu0 %v891
      %893 = vperm.xlu0 %892, %v349
      %v894 = vpop.permute.xlu0 %893
      %v895 = vlaneseq
      %v896 = vshrl.u32 %v895, 7
      %v897 = vadd.s32 %v896, 1
      %898 = vset.pattern.permute.xlu0 %v897
      %899 = vperm.xlu0 %898, %v362
      %v900 = vpop.permute.xlu0 %899
      %v901 = vlaneseq
      %v902 = vshrl.u32 %v901, 7
      %v903 = vadd.s32 %v902, 1
      %904 = vset.pattern.permute.xlu0 %v903
      %905 = vperm.xlu0 %904, %v375
      %v906 = vpop.permute.xlu0 %905
      %v907 = vlaneseq
      %v908 = vshrl.u32 %v907, 7
      %v909 = vadd.s32 %v908, 1
      %910 = vset.pattern.permute.xlu0 %v909
      %911 = vperm.xlu0 %910, %v388
      %v912 = vpop.permute.xlu0 %911
      %v913 = vlaneseq
      %v914 = vshrl.u32 %v913, 7
      %v915 = vadd.s32 %v914, 1
      %916 = vset.pattern.permute.xlu0 %v915
      %917 = vperm.xlu0 %916, %v401
      %v918 = vpop.permute.xlu0 %917
      %v919 = vlaneseq
      %v920 = vshrl.u32 %v919, 7
      %v921 = vadd.s32 %v920, 1
      %922 = vset.pattern.permute.xlu0 %v921
      %923 = vperm.xlu0 %922, %v414
      %v924 = vpop.permute.xlu0 %923
      %v925 = vadd.f32 %v882, %v869
      %v926 = vadd.f32 %v888, %v870
      %v927 = vadd.f32 %v894, %v871
      %v928 = vadd.f32 %v900, %v872
      %v929 = vadd.f32 %v906, %v873
      %v930 = vadd.f32 %v912, %v874
      %v931 = vadd.f32 %v918, %v875
      %v932 = vadd.f32 %v924, %v876
      %s933 = scalar_lea.vmem %s291, 16
      %934 = vst.msk [vmem:[%s933 + $0x1] sm:$0xff] %vm583, %v925
      %935 = vst.msk [vmem:[%s933 + $0x11] sm:$0xff] %vm583, %v926
      %936 = vst.msk [vmem:[%s933 + $0x21] sm:$0xff] %vm583, %v927
      %937 = vst.msk [vmem:[%s933 + $0x31] sm:$0xff] %vm583, %v928
      %938 = vst.msk [vmem:[%s933 + $0x41] sm:$0xff] %vm583, %v929
      %939 = vst.msk [vmem:[%s933 + $0x51] sm:$0xff] %vm583, %v930
      %940 = vst.msk [vmem:[%s933 + $0x61] sm:$0xff] %vm583, %v931
      %941 = vst.msk [vmem:[%s933 + $0x71] sm:$0xff] %vm583, %v932
      %p942 = scmp.lt.s32.totalorder %s17, 1
      %s943 = scalar_select %p942, %s17, 1
      %s944 = smul.addr %s943, 18
      %s945 = smul.addr %s944, 8
      %s946 = scalar_lea.vmem %s6, %s945
      // Predicated region
      $region45: #{graph_attn_bias_forward.1} parent=43 // pred_check
        %p947 = pneg %p176
      $region46: #{graph_attn_bias_forward.1} parent=43 // pred_check_branch
        %949 = sbr.rel (%p947) target = $region48
      $region47: #{graph_attn_bias_forward.1} parent=43 // pred_region
        _
      $region48: #{graph_attn_bias_forward.1} parent=43 // pred_fallthru
        _
    $region44: #{graph_attn_bias_forward.1} parent=5 // pred_fallthru
      _
    %p950 = scmp.le.s32.totalorder 2, %s12
    // Predicated region
    $region49: #{graph_attn_bias_forward.1} parent=5 // pred_check
      %p951 = pneg %p950
    $region50: #{graph_attn_bias_forward.1} parent=5 // pred_check_branch
      %953 = sbr.rel (%p951) target = $region52
    $region51: #{graph_attn_bias_forward.1} parent=5 // pred_region
      %s954 = ssub.s32 %s12, 2
      // Predicated region
      $region53: #{graph_attn_bias_forward.1} parent=51 // pred_check
        %p955 = pneg %p182
      $region54: #{graph_attn_bias_forward.1} parent=51 // pred_check_branch
        %957 = sbr.rel (%p955) target = $region56
      $region55: #{graph_attn_bias_forward.1} parent=51 // pred_region
        %p958 = scmp.lt.s32.totalorder %s18, 1
        %s959 = scalar_select %p958, %s18, 1
        %s960 = smul.addr %s959, 18
        %s961 = smul.addr %s960, 8
        %s962 = scalar_lea.vmem %s6, %s961
      $region56: #{graph_attn_bias_forward.1} parent=51 // pred_fallthru
        _
    $region52: #{graph_attn_bias_forward.1} parent=5 // pred_fallthru
      _
  $region6: #{graph_attn_bias_forward.1} parent=0 // loop_footer
    %s16 = sadd.s32 1, %s12
  $region7: #{graph_attn_bias_forward.1} parent=0 // loop_footer_branch
    %11 = sbr.rel target = $region3
  $region8: #{graph_attn_bias_forward.1} parent=0 // loop_exit
    _

</llo_original>
